<compile_context>
chip_gen: v6e
topology: v6e:2x2x1
jax: 0.10.0
libtpu: 0.0.40
codegen_flags: <defaults>
</compile_context>

<pallas_src>
import math

import jax
import jax.numpy as jnp
from jax.experimental import pallas as pl
from jax.experimental.pallas import tpu as pltpu


def _gate_kernel_packed(c_ref, x1_ref, x2_ref, v1_ref, v2_ref, seg_ref, o_ref):
    """P logical rows packed per 128-lane row; seg is a (W,W) block-diag 0/1
    matrix that performs the segmented reduce + broadcast in one matmul."""
    x1 = x1_ref[...].astype(jnp.float32)            # (TN, W)
    x2 = x2_ref[...].astype(jnp.float32)            # (TN, W)
    t = x1 * v1_ref[...] + x2 * v2_ref[...]         # per-lane logit contributions
    logit = jnp.dot(t, seg_ref[...],
                    preferred_element_type=jnp.float32) + c_ref[0, 0]
    gate = jax.nn.sigmoid(logit)                    # constant across each D-lane group
    o_ref[...] = (x2 + gate * (x1 - x2)).astype(o_ref.dtype)


def _gate_kernel_rowwise(c_ref, x1_ref, x2_ref, v1_ref, v2_ref, o_ref):
    """General path (one logical row per physical row, any D)."""
    x1 = x1_ref[...].astype(jnp.float32)            # (TN, D)
    x2 = x2_ref[...].astype(jnp.float32)
    t = x1 * v1_ref[...] + x2 * v2_ref[...]
    logit = jnp.sum(t, axis=-1, keepdims=True) + c_ref[0, 0]
    gate = jax.nn.sigmoid(logit)                    # (TN, 1)
    o_ref[...] = (x2 + gate * (x1 - x2)).astype(o_ref.dtype)


def _round_up(x, m):
    return (x + m - 1) // m * m


def gate_layer(x1, x2, w1, b1, w2, b2, *, tile_n=512):
    """GateLayer forward.

    x1, x2: (..., D).  w1: (2D, D) (input-major, i.e. transposed from torch's
    (D, 2D)), b1: (D,), w2: (D, 1), b2: (1,).
    """
    D = x1.shape[-1]
    lead = x1.shape[:-1]
    N = math.prod(lead) if lead else 1
    out_dtype = x1.dtype

    # ---- fold the two Linears into two length-D vectors and a scalar ------
    w1f = jnp.asarray(w1, jnp.float32)
    w2f = jnp.asarray(w2, jnp.float32).reshape(D, 1)
    b1f = jnp.asarray(b1, jnp.float32).reshape(1, D)
    b2f = jnp.asarray(b2, jnp.float32).reshape(1, 1)
    v1 = (w1f[:D, :] @ w2f).reshape(1, D)           # acts on x1
    v2 = (w1f[D:, :] @ w2f).reshape(1, D)           # acts on x2
    c = b1f @ w2f + b2f                             # (1, 1) scalar

    # ---- lane-dense packing: P logical rows per 128-lane physical row -----
    if D < 128 and 128 % D == 0:
        P = 128 // D
    else:
        P = 1
    W = P * D

    x1f = x1.reshape(N, D)
    x2f = x2.reshape(N, D)

    np_needed = pl.cdiv(N, P)                       # packed rows needed
    tile = min(tile_n, _round_up(np_needed, 8))     # keep big tiles for big N
    Np = _round_up(np_needed, tile)
    N_pad = Np * P
    if N_pad != N:
        pad = ((0, N_pad - N), (0, 0))
        x1f = jnp.pad(x1f, pad)
        x2f = jnp.pad(x2f, pad)
    x1p = x1f.reshape(Np, W)
    x2p = x2f.reshape(Np, W)

    v1t = jnp.tile(v1, (1, P))                      # (1, W): lane j -> v1[j % D]
    v2t = jnp.tile(v2, (1, P))

    grid = (Np // tile,)
    row_spec = pl.BlockSpec((tile, W), lambda i: (i, 0))
    vec_spec = pl.BlockSpec((1, W), lambda i: (0, 0))
    smem_spec = pl.BlockSpec(memory_space=pltpu.MemorySpace.SMEM)

    if P > 1:
        seg_ids = jnp.arange(W, dtype=jnp.int32) // D
        seg = (seg_ids[:, None] == seg_ids[None, :]).astype(jnp.float32)  # (W, W)
        inputs = (c, x1p, x2p, v1t, v2t, seg)
        in_specs = [smem_spec, row_spec, row_spec, vec_spec, vec_spec,
                    pl.BlockSpec((W, W), lambda i: (0, 0))]
        kernel = _gate_kernel_packed
    else:
        inputs = (c, x1p, x2p, v1t, v2t)
        in_specs = [smem_spec, row_spec, row_spec, vec_spec, vec_spec]
        kernel = _gate_kernel_rowwise

    out = pl.pallas_call(
        kernel,
        out_shape=jax.ShapeDtypeStruct((Np, W), out_dtype),
        grid_spec=pltpu.PrefetchScalarGridSpec(
            num_scalar_prefetch=0,
            grid=grid,
            in_specs=in_specs,
            out_specs=row_spec,
        ),
        compiler_params=pltpu.CompilerParams(
            dimension_semantics=("parallel",)),     # lets v7x shard rows on 2 TCs
    )(*inputs)

    out = out.reshape(N_pad, D)[:N]
    return out.reshape(*lead, D)


def _reference(x1, x2, w1, b1, w2, b2):
    cat = jnp.concatenate([x1, x2], axis=-1)
    h = cat @ w1 + b1
    gate = jax.nn.sigmoid(h @ w2 + b2)
    return gate * x1 + (1.0 - gate) * x2


if __name__ == "__main__":
    # Small shapes consistent with GateLayer: batch=2, seq=8, hidden=32
    B, S, D = 2, 8, 32
    key = jax.random.PRNGKey(0)
    k1, k2, k3, k4, k5, k6 = jax.random.split(key, 6)

    x1 = jax.random.normal(k1, (B, S, D), dtype=jnp.float32)
    x2 = jax.random.normal(k2, (B, S, D), dtype=jnp.float32)

    # Deterministic synthetic parameters (not a checkpoint load).
    # nn.Linear(2D, D): torch weight (D, 2D) -> stored transposed as (2D, D).
    w1 = jax.random.normal(k3, (2 * D, D), dtype=jnp.float32) / math.sqrt(2 * D)
    b1 = jax.random.normal(k4, (D,), dtype=jnp.float32) * 0.01
    # nn.Linear(D, 1): torch weight (1, D) -> stored transposed as (D, 1).
    w2 = jax.random.normal(k5, (D, 1), dtype=jnp.float32) / math.sqrt(D)
    b2 = jax.random.normal(k6, (1,), dtype=jnp.float32) * 0.01

    out = jax.block_until_ready(gate_layer(x1, x2, w1, b1, w2, b2))
    ref = _reference(x1, x2, w1, b1, w2, b2)
    assert out.shape == (B, S, D)
    assert jnp.allclose(out, ref, atol=1e-5, rtol=1e-5), "mismatch (packed path)"

    # Also exercise the general row-wise path (D >= 128, no packing).
    D2 = 256
    j1, j2, j3, j4, j5, j6 = jax.random.split(jax.random.PRNGKey(1), 6)
    y1 = jax.random.normal(j1, (B, S, D2), dtype=jnp.float32)
    y2 = jax.random.normal(j2, (B, S, D2), dtype=jnp.float32)
    u1 = jax.random.normal(j3, (2 * D2, D2), dtype=jnp.float32) / math.sqrt(2 * D2)
    c1 = jax.random.normal(j4, (D2,), dtype=jnp.float32) * 0.01
    u2 = jax.random.normal(j5, (D2, 1), dtype=jnp.float32) / math.sqrt(D2)
    c2 = jax.random.normal(j6, (1,), dtype=jnp.float32) * 0.01
    out2 = jax.block_until_ready(gate_layer(y1, y2, u1, c1, u2, c2))
    ref2 = _reference(y1, y2, u1, c1, u2, c2)
    assert jnp.allclose(out2, ref2, atol=1e-4, rtol=1e-5), "mismatch (rowwise path)"

    print("KERNEL_OK")
</pallas_src>

<mosaic_0001>
module attributes {stable_mosaic.version = 11 : i64} {
  func.func @_gate_kernel_packed(%arg0: i32, %arg1: memref<1x1xf32, #tpu.memory_space<smem>>, %arg2: memref<8x128xf32, #tpu.memory_space<vmem>>, %arg3: memref<8x128xf32, #tpu.memory_space<vmem>>, %arg4: memref<1x128xf32, #tpu.memory_space<vmem>>, %arg5: memref<1x128xf32, #tpu.memory_space<vmem>>, %arg6: memref<128x128xf32, #tpu.memory_space<vmem>>, %arg7: memref<8x128xf32, #tpu.memory_space<vmem>>) attributes {dimension_semantics = [#tpu.dimension_semantics<parallel>], iteration_bounds = array<i64: 1>, scalar_prefetch = 0 : i64, scratch_operands = 0 : i64, tpu.core_type = #tpu.core_type<tc>, window_params = [{transform_indices = @transform_0, window_bounds = array<i64: 1, 1>}, {transform_indices = @transform_1, window_bounds = array<i64: 8, 128>}, {transform_indices = @transform_2, window_bounds = array<i64: 8, 128>}, {pipeline_mode = #tpu.pipeline_mode<synchronous>, transform_indices = @transform_3, window_bounds = array<i64: 1, 128>}, {pipeline_mode = #tpu.pipeline_mode<synchronous>, transform_indices = @transform_4, window_bounds = array<i64: 1, 128>}, {pipeline_mode = #tpu.pipeline_mode<synchronous>, transform_indices = @transform_5, window_bounds = array<i64: 128, 128>}, {transform_indices = @transform_6, window_bounds = array<i64: 8, 128>}]} {
    %c0 = arith.constant 0 : index
    %c0_0 = arith.constant 0 : index
    %0 = vector.load %arg2[%c0, %c0_0] : memref<8x128xf32, #tpu.memory_space<vmem>>, vector<8x128xf32>
    %c0_1 = arith.constant 0 : index
    %c0_2 = arith.constant 0 : index
    %1 = vector.load %arg3[%c0_1, %c0_2] : memref<8x128xf32, #tpu.memory_space<vmem>>, vector<8x128xf32>
    %c0_3 = arith.constant 0 : index
    %c0_4 = arith.constant 0 : index
    %2 = vector.load %arg4[%c0_3, %c0_4] : memref<1x128xf32, #tpu.memory_space<vmem>>, vector<1x128xf32>
    %3 = vector.broadcast %2 : vector<1x128xf32> to vector<8x128xf32>
    %4 = arith.mulf %0, %3 : vector<8x128xf32>
    %c0_5 = arith.constant 0 : index
    %c0_6 = arith.constant 0 : index
    %5 = vector.load %arg5[%c0_5, %c0_6] : memref<1x128xf32, #tpu.memory_space<vmem>>, vector<1x128xf32>
    %6 = vector.broadcast %5 : vector<1x128xf32> to vector<8x128xf32>
    %7 = arith.mulf %1, %6 : vector<8x128xf32>
    %8 = arith.addf %4, %7 : vector<8x128xf32>
    %c0_7 = arith.constant 0 : index
    %c0_8 = arith.constant 0 : index
    %9 = vector.load %arg6[%c0_7, %c0_8] : memref<128x128xf32, #tpu.memory_space<vmem>>, vector<128x128xf32>
    %cst = arith.constant dense<0.000000e+00> : vector<8x128xf32>
    %10 = tpu.matmul %8, %9, %cst {dimension_numbers = #tpu.dot_dimension_numbers<[1], [0], [0], [1], [0, 0, 1, 1], [], []>} : vector<8x128xf32>, vector<128x128xf32>, vector<8x128xf32> -> vector<8x128xf32>
    %c0_9 = arith.constant 0 : index
    %c0_10 = arith.constant 0 : index
    %11 = memref.load %arg1[%c0_9, %c0_10] : memref<1x1xf32, #tpu.memory_space<smem>>
    %12 = vector.broadcast %11 : f32 to vector<8x128xf32>
    %13 = arith.addf %10, %12 : vector<8x128xf32>
    %14 = arith.negf %13 : vector<8x128xf32>
    %15 = math.exp %14 : vector<8x128xf32>
    %cst_11 = arith.constant 1.000000e+00 : f32
    %16 = vector.broadcast %cst_11 : f32 to vector<8x128xf32>
    %17 = arith.addf %16, %15 : vector<8x128xf32>
    %18 = arith.divf %16, %17 : vector<8x128xf32>
    %19 = arith.subf %0, %1 : vector<8x128xf32>
    %20 = arith.mulf %18, %19 : vector<8x128xf32>
    %21 = arith.addf %1, %20 : vector<8x128xf32>
    %c0_12 = arith.constant 0 : index
    %c0_13 = arith.constant 0 : index
    %22 = vector.load %arg7[%c0_12, %c0_13] : memref<8x128xf32, #tpu.memory_space<vmem>>, vector<8x128xf32>
    tpu.vector_store %arg7[%c0_12, %c0_13], %21 {strides = array<i32>} : memref<8x128xf32, #tpu.memory_space<vmem>>, vector<8x128xf32>,
    return
  }
  func.func @transform_0(%arg0: i32) -> (i32, i32) {
    %c0_i32 = arith.constant 0 : i32
    %c0_i32_0 = arith.constant 0 : i32
    %c0_i32_1 = arith.constant 0 : i32
    return %c0_i32, %c0_i32_0 : i32, i32
  }
  func.func @transform_1(%arg0: i32) -> (i32, i32) {
    %c0_i32 = arith.constant 0 : i32
    %c0_i32_0 = arith.constant 0 : i32
    return %arg0, %c0_i32 : i32, i32
  }
  func.func @transform_2(%arg0: i32) -> (i32, i32) {
    %c0_i32 = arith.constant 0 : i32
    %c0_i32_0 = arith.constant 0 : i32
    return %arg0, %c0_i32 : i32, i32
  }
  func.func @transform_3(%arg0: i32) -> (i32, i32) {
    %c0_i32 = arith.constant 0 : i32
    %c0_i32_0 = arith.constant 0 : i32
    %c0_i32_1 = arith.constant 0 : i32
    return %c0_i32, %c0_i32_0 : i32, i32
  }
  func.func @transform_4(%arg0: i32) -> (i32, i32) {
    %c0_i32 = arith.constant 0 : i32
    %c0_i32_0 = arith.constant 0 : i32
    %c0_i32_1 = arith.constant 0 : i32
    return %c0_i32, %c0_i32_0 : i32, i32
  }
  func.func @transform_5(%arg0: i32) -> (i32, i32) {
    %c0_i32 = arith.constant 0 : i32
    %c0_i32_0 = arith.constant 0 : i32
    %c0_i32_1 = arith.constant 0 : i32
    return %c0_i32, %c0_i32_0 : i32, i32
  }
  func.func @transform_6(%arg0: i32) -> (i32, i32) {
    %c0_i32 = arith.constant 0 : i32
    %c0_i32_0 = arith.constant 0 : i32
    return %arg0, %c0_i32 : i32, i32
  }
}

</mosaic_0001>

<llo_original>
// kernel: tpu_custom_call.1
$region0: #{tpu_custom_call.1}
  #allocation0 [shape = 'u32[]', space=smem, size = 0x4, offset = 0x4, fixed_abs, tag = 'smem constant byte address 0x4 - core index']
  #allocation1 [shape = 'u32[144,128]{1,0:T(1,128)}', space=vmem, size = 0x12000, scoped, tag = 'internal scratch']
  #allocation2 [shape = 'f32[1,1]{1,0:T(1,128)S(6)}', space=smem, size = 0x200, scoped, tag = 'scoped memory for tpu_custom_call.1']
  %s0 = inlined_call_operand.<no memory space> [shape: f32[1,1], index: 0, kind: input, shape index: {}]
  %s1 = inlined_call_operand.hbm [shape: f32[8,128], index: 1, kind: input, shape index: {}]
  %s2 = inlined_call_operand.hbm [shape: f32[8,128], index: 2, kind: input, shape index: {}]
  %s3 = inlined_call_operand.vmem [shape: f32[1,128], index: 3, kind: input, shape index: {}]
  %s4 = inlined_call_operand.vmem [shape: f32[1,128], index: 4, kind: input, shape index: {}]
  %s5 = inlined_call_operand.hbm [shape: f32[128,128], index: 5, kind: input, shape index: {}]
  %s6 = inlined_call_operand.hbm [shape: f32[8,128], index: 6, kind: output, shape index: {}]
  %s7 = sld [smem:[#allocation0]]
  $region46: #{tpu_custom_call.1} parent=0
    _
  %s9 = ssub.s32 1, %s7
  %s10 = scalar_select 0, %s9, %s7
  %11 = sst [smem:[#allocation2]] %s0
  $region1: #{tpu_custom_call.1} parent=0
    #allocation3 [shape = 'u8[4096]{0}', space=vmem, size = 0x1000, scoped, tag = 'input window, operand 1, single buffered']
    #allocation4 [shape = 's32[1]{0}', space=sflag, size = 0x4, scoped, tag = 'scoped memory for tpu_custom_call.1']
    #allocation5 [shape = 's32[1]{0}', space=sflag, size = 0x4, scoped, tag = 'scoped memory for tpu_custom_call.1']
    #allocation6 [shape = 'u8[4096]{0}', space=vmem, size = 0x1000, scoped, tag = 'input window, operand 2, single buffered']
    #allocation7 [shape = 's32[1]{0}', space=sflag, size = 0x4, scoped, tag = 'scoped memory for tpu_custom_call.1']
    #allocation8 [shape = 'u8[65536]{0}', space=vmem, size = 0x10000, scoped, tag = 'input window, operand 5, single buffered']
    #allocation9 [shape = 'u8[4096]{0}', space=vmem, size = 0x1000, scoped, tag = 'output window, operand 0, single buffered']
    %12 = vsyncpa [#allocation4], 0
    %13 = vsyncpa [#allocation7], 0
    %14 = vsyncpa [#allocation5], 0
    // Predicated region
    $region2: #{tpu_custom_call.1} parent=1 // pred_check
      _
    $region3: #{tpu_custom_call.1} parent=1 // pred_check_branch
      %16 = sbr.rel (0) target = $region5
    $region4: #{tpu_custom_call.1} parent=1 // pred_region
      _
    $region5: #{tpu_custom_call.1} parent=1 // pred_fallthru
      _
    // Predicated region
    $region6: #{tpu_custom_call.1} parent=1 // pred_check
      _
    $region7: #{tpu_custom_call.1} parent=1 // pred_check_branch
      %18 = sbr.rel (0) target = $region9
    $region8: #{tpu_custom_call.1} parent=1 // pred_region
      %s20 = ssub.s32 128, 128
      %21 = vsyncadd [#allocation4], %s20
      %s23 = sshll.u32 [#allocation3], 4
      %s24 = int_to_ptr.vmem [resolvable:$true] %s23
      %26 = dma.hbm_to_vmem [thread:$0]  %s1, 128, %s24, [#allocation4]
    $region9: #{tpu_custom_call.1} parent=1 // pred_fallthru
      _
    // Predicated region
    $region10: #{tpu_custom_call.1} parent=1 // pred_check
      _
    $region11: #{tpu_custom_call.1} parent=1 // pred_check_branch
      %28 = sbr.rel (0) target = $region13
    $region12: #{tpu_custom_call.1} parent=1 // pred_region
      %s30 = ssub.s32 128, 128
      %31 = vsyncadd [#allocation7], %s30
      %s33 = sshll.u32 [#allocation6], 4
      %s34 = int_to_ptr.vmem [resolvable:$true] %s33
      %36 = dma.hbm_to_vmem [thread:$0]  %s2, 128, %s34, [#allocation7]
    $region13: #{tpu_custom_call.1} parent=1 // pred_fallthru
      _
    // Predicated region
    $region14: #{tpu_custom_call.1} parent=1 // pred_check
      _
    $region15: #{tpu_custom_call.1} parent=1 // pred_check_branch
      %38 = sbr.rel (0) target = $region17
    $region16: #{tpu_custom_call.1} parent=1 // pred_region
      _
    $region17: #{tpu_custom_call.1} parent=1 // pred_fallthru
      _
    // Predicated region
    $region18: #{tpu_custom_call.1} parent=1 // pred_check
      _
    $region19: #{tpu_custom_call.1} parent=1 // pred_check_branch
      %40 = sbr.rel (0) target = $region21
    $region20: #{tpu_custom_call.1} parent=1 // pred_region
      _
    $region21: #{tpu_custom_call.1} parent=1 // pred_fallthru
      _
    // Predicated region
    $region22: #{tpu_custom_call.1} parent=1 // pred_check
      _
    $region23: #{tpu_custom_call.1} parent=1 // pred_check_branch
      %42 = sbr.rel (0) target = $region25
    $region24: #{tpu_custom_call.1} parent=1 // pred_region
      %s44 = ssub.s32 2048, 2048
      %45 = vsyncadd [#allocation7], %s44
      %s46 = sshll.u32 [#allocation8], 4
      %s47 = int_to_ptr.vmem [resolvable:$true] %s46
      %52 = dma.hbm_to_vmem [thread:$0]  %s5, 2048, %s47, [#allocation7], 128, 128, 8
    $region25: #{tpu_custom_call.1} parent=1 // pred_fallthru
      _
    // Predicated region
    $region26: #{tpu_custom_call.1} parent=1 // pred_check
      _
    $region27: #{tpu_custom_call.1} parent=1 // pred_check_branch
      %54 = sbr.rel (0) target = $region29
    $region28: #{tpu_custom_call.1} parent=1 // pred_region
      %55 = dma.done [#allocation4], 128
    $region29: #{tpu_custom_call.1} parent=1 // pred_fallthru
      _
    // Predicated region
    $region30: #{tpu_custom_call.1} parent=1 // pred_check
      _
    $region31: #{tpu_custom_call.1} parent=1 // pred_check_branch
      %57 = sbr.rel (0) target = $region33
    $region32: #{tpu_custom_call.1} parent=1 // pred_region
      %58 = dma.done [#allocation7], 128
    $region33: #{tpu_custom_call.1} parent=1 // pred_fallthru
      _
    // Predicated region
    $region34: #{tpu_custom_call.1} parent=1 // pred_check
      _
    $region35: #{tpu_custom_call.1} parent=1 // pred_check_branch
      %60 = sbr.rel (0) target = $region37
    $region36: #{tpu_custom_call.1} parent=1 // pred_region
      %61 = dma.done [#allocation7], 2048
    $region37: #{tpu_custom_call.1} parent=1 // pred_fallthru
      _
    %v62 = vld [vmem:[#allocation3] sm:$0xff]
    %v63 = vld [vmem:[#allocation6] sm:$0xff]
    %v64 = vld [vmem:[%s3] sm:$0x1]
    %v66 = vlaneseq
    %v67 = vshrl.u32 %v66, 7
    %v68 = vsub.s32 0, %v67
    %v69 = vrot.slane %v64, %v68
    %v71 = vmul.f32 %v62, %v69
    %v72 = vld [vmem:[%s4] sm:$0x1]
    %v74 = vlaneseq
    %v75 = vshrl.u32 %v74, 7
    %v76 = vsub.s32 0, %v75
    %v77 = vrot.slane %v72, %v76
    %v79 = vmul.f32 %v63, %v77
    %v80 = vadd.f32 %v71, %v79
    %v81 = vld [vmem:[#allocation8] sm:$0xff]
    %v82 = vld [vmem:[#allocation8 + $0x8] sm:$0xff]
    %v83 = vld [vmem:[#allocation8 + $0x10] sm:$0xff]
    %v84 = vld [vmem:[#allocation8 + $0x18] sm:$0xff]
    %v85 = vld [vmem:[#allocation8 + $0x20] sm:$0xff]
    %v86 = vld [vmem:[#allocation8 + $0x28] sm:$0xff]
    %v87 = vld [vmem:[#allocation8 + $0x30] sm:$0xff]
    %v88 = vld [vmem:[#allocation8 + $0x38] sm:$0xff]
    %v89 = vld [vmem:[#allocation8 + $0x40] sm:$0xff]
    %v90 = vld [vmem:[#allocation8 + $0x48] sm:$0xff]
    %v91 = vld [vmem:[#allocation8 + $0x50] sm:$0xff]
    %v92 = vld [vmem:[#allocation8 + $0x58] sm:$0xff]
    %v93 = vld [vmem:[#allocation8 + $0x60] sm:$0xff]
    %v94 = vld [vmem:[#allocation8 + $0x68] sm:$0xff]
    %v95 = vld [vmem:[#allocation8 + $0x70] sm:$0xff]
    %v96 = vld [vmem:[#allocation8 + $0x78] sm:$0xff]
    %s97 = sld [smem:[#allocation2]]
    %v98 = vstv %s97
    %99 = vmatprep.subr.mxu0 0.0
    %100 = vmatpush1.msra.mxu0 %v96
    %101 = vmatprep.subr.mxu0 0.0
    %102 = vmatpush1.msra.mxu0 %v95
    %103 = vmatprep.subr.mxu0 0.0
    %104 = vmatpush1.msra.mxu0 %v94
    %105 = vmatprep.subr.mxu0 0.0
    %106 = vmatpush1.msra.mxu0 %v93
    %107 = vmatprep.subr.mxu0 0.0
    %108 = vmatpush1.msra.mxu0 %v92
    %109 = vmatprep.subr.mxu0 0.0
    %110 = vmatpush1.msra.mxu0 %v91
    %111 = vmatprep.subr.mxu0 0.0
    %112 = vmatpush1.msra.mxu0 %v90
    %113 = vmatprep.subr.mxu0 0.0
    %114 = vmatpush1.msra.mxu0 %v89
    %115 = vmatprep.subr.mxu0 0.0
    %116 = vmatpush1.msra.mxu0 %v88
    %117 = vmatprep.subr.mxu0 0.0
    %118 = vmatpush1.msra.mxu0 %v87
    %119 = vmatprep.subr.mxu0 0.0
    %120 = vmatpush1.msra.mxu0 %v86
    %121 = vmatprep.subr.mxu0 0.0
    %122 = vmatpush1.msra.mxu0 %v85
    %123 = vmatprep.subr.mxu0 0.0
    %124 = vmatpush1.msra.mxu0 %v84
    %125 = vmatprep.subr.mxu0 0.0
    %126 = vmatpush1.msra.mxu0 %v83
    %127 = vmatprep.subr.mxu0 0.0
    %128 = vmatpush1.msra.mxu0 %v82
    %129 = vmatprep.subr.mxu0 0.0
    %130 = vmatpush1.msra.mxu0 %v81
    %131 = vmatprep.subr.mxu0 0.0
    %132 = vmatpush2.msra.mxu0 0.0
    %133 = vmatprep.subr.mxu0 0.0
    %134 = vmatpush2.msra.mxu0 0.0
    %135 = vmatprep.subr.mxu0 0.0
    %136 = vmatpush2.msra.mxu0 0.0
    %137 = vmatprep.subr.mxu0 0.0
    %138 = vmatpush2.msra.mxu0 0.0
    %139 = vmatprep.subr.mxu0 0.0
    %140 = vmatpush2.msra.mxu0 0.0
    %141 = vmatprep.subr.mxu0 0.0
    %142 = vmatpush2.msra.mxu0 0.0
    %143 = vmatprep.subr.mxu0 0.0
    %144 = vmatpush2.msra.mxu0 0.0
    %145 = vmatprep.subr.mxu0 0.0
    %146 = vmatpush2.msra.mxu0 0.0
    %147 = vmatprep.subr.mxu0 0.0
    %148 = vmatpush2.msra.mxu0 0.0
    %149 = vmatprep.subr.mxu0 0.0
    %150 = vmatpush2.msra.mxu0 0.0
    %151 = vmatprep.subr.mxu0 0.0
    %152 = vmatpush2.msra.mxu0 0.0
    %153 = vmatprep.subr.mxu0 0.0
    %154 = vmatpush2.msra.mxu0 0.0
    %155 = vmatprep.subr.mxu0 0.0
    %156 = vmatpush2.msra.mxu0 0.0
    %157 = vmatprep.subr.mxu0 0.0
    %158 = vmatpush2.msra.mxu0 0.0
    %159 = vmatprep.subr.mxu0 0.0
    %160 = vmatpush2.msra.mxu0 0.0
    %161 = vmatprep.subr.mxu0 0.0
    %162 = vmatpush2.msra.mxu0 0.0
    %163 = vmatprep.mubr.f32.mxu0 0.0
    %164 = vmatmul.mubr.f32.gmra.mxu0 %v80
    %v165 = vpop.f32.mrf.mxu0
    %v166 = vadd.f32 %v98, %v165
    %v167 = vpop.f32.mrf.mxu0
    %168 = vdwg.mxu0
    %v169 = vxor.u32 %v166, 2147483648
    %v170 = vmul.f32 %v169, 1.442695
    %v171 = vpow.pop %v170
    %v172 = vadd.f32 %v171, 1.0
    %v173 = vrcp.pop %v172
    %v174 = vmul.f32 1.0, %v173
    %v175 = vsub.f32 %v62, %v63
    %v176 = vmul.f32 %v174, %v175
    %v177 = vadd.f32 %v63, %v176
    %178 = vst [vmem:[#allocation9] sm:$0xff] %v177
    // Predicated region
    $region38: #{tpu_custom_call.1} parent=1 // pred_check
      _
    $region39: #{tpu_custom_call.1} parent=1 // pred_check_branch
      %180 = sbr.rel (0) target = $region41
    $region40: #{tpu_custom_call.1} parent=1 // pred_region
      %s182 = ssub.s32 128, 128
      %183 = vsyncadd [#allocation5], %s182
      %s185 = sshll.u32 [#allocation9], 4
      %s186 = int_to_ptr.vmem [resolvable:$true] %s185
      %188 = dma.vmem_to_hbm [thread:$0]  %s186, 128, %s6, [#allocation5]
    $region41: #{tpu_custom_call.1} parent=1 // pred_fallthru
      _
    // Predicated region
    $region42: #{tpu_custom_call.1} parent=1 // pred_check
      _
    $region43: #{tpu_custom_call.1} parent=1 // pred_check_branch
      %190 = sbr.rel (0) target = $region45
    $region44: #{tpu_custom_call.1} parent=1 // pred_region
      %191 = dma.done [#allocation5], 128
    $region45: #{tpu_custom_call.1} parent=1 // pred_fallthru
      _
    %192 = vsyncpa [#allocation4], 1
    %193 = vsyncpa [#allocation7], 1
    %194 = vsyncpa [#allocation5], 1

</llo_original>
